<compile_context>
chip_gen: v5e
topology: v5e:2x2
jax: 0.10.0
libtpu: 0.0.40
codegen_flags: <defaults>
</compile_context>

<pallas_src>
import jax
import jax.numpy as jnp
from jax.experimental import pallas as pl
from jax.experimental.pallas import tpu as pltpu


_LANES = 128


def _round_up(x, m):
    return (x + m - 1) // m * m


def _vmem_limit_bytes():
    """Scoped-VMEM limit gated on the chip generation (v7x has 64 MiB/TC)."""
    try:
        cap = int(pltpu.get_tpu_info().vmem_capacity_bytes)
    except Exception:
        cap = 64 * 1024 * 1024  # conservative fallback (interpret mode etc.)
    return int(min(cap // 2, 64 * 1024 * 1024))


def _pick_tile_h(h, w, c_in, c_out_p, vmem_limit):
    """Largest divisor of H whose row-block fits the VMEM budget (<=8192 rows)."""
    # Rough per-row pass-1 cost: bf16 conv block (double-buffered) + in-kernel
    # f32 accumulator + bf16 im2col patches, all 128-lane padded.
    per_row = c_out_p * (2 * 2 + 4) + _round_up(9 * c_in, _LANES) * 2
    max_rows = max(8, min(8192, (vmem_limit // 3) // per_row))
    best = 1
    for th in range(1, h + 1):
        if h % th == 0 and th * w <= max_rows:
            best = th
    return best


# ----------------------------------------------------------------------------
# Pass 1: 3x3 conv as a single K=9*C_in matmul + per-tile BN partial stats
# ----------------------------------------------------------------------------
def _conv_stats_kernel(x_ref, w_ref, conv_ref, sum_ref, m2_ref):
    # x_ref:    [1, H+2, W+2, C_in]   bf16 (whole padded sample, resident
    #                                      across the row-block grid axis)
    # w_ref:    [9*C_in, C_out_p]     bf16 (resident)
    # conv_ref: [1, TH, W, C_out_p]   bf16
    # sum_ref:  [1, 1, 1, C_out_p]    f32  per (sample, row-block) partial sum
    # m2_ref:   [1, 1, 1, C_out_p]    f32  per-tile centered sum of squares
    th = conv_ref.shape[1]
    w = conv_ref.shape[2]
    c_out_p = conv_ref.shape[3]
    c_in = x_ref.shape[3]

    hb = pl.program_id(1)
    row0 = pl.multiple_of(hb * th, th)
    xt = x_ref[0, pl.ds(row0, th + 2), :, :]            # [TH+2, W+2, C_in]

    # In-VMEM mini im2col: one K = 9*C_in MXU matmul instead of 9 K=C_in dots.
    slabs = [xt[ky:ky + th, kx:kx + w, :]
             for ky in range(3) for kx in range(3)]     # 9 x [TH, W, C_in]
    patches = jnp.concatenate(slabs, axis=-1)           # [TH, W, 9*C_in]
    patches = patches.reshape(th * w, 9 * c_in)
    acc = jnp.dot(patches, w_ref[...],
                  preferred_element_type=jnp.float32)   # [TH*W, C_out_p] f32

    conv_ref[...] = acc.astype(conv_ref.dtype).reshape(1, th, w, c_out_p)

    # Per-tile centered statistics (combined Chan-style in the epilogue) to
    # avoid the catastrophic cancellation of the E[x^2] - E[x]^2 formula.
    s = jnp.sum(acc, axis=0, keepdims=True)             # [1, C_out_p]
    mu = s * (1.0 / (th * w))
    d = acc - mu
    m2 = jnp.sum(d * d, axis=0, keepdims=True)
    sum_ref[...] = s.reshape(1, 1, 1, c_out_p)
    m2_ref[...] = m2.reshape(1, 1, 1, c_out_p)


# ----------------------------------------------------------------------------
# Pass 2: folded BatchNorm affine (y*scale + shift) + per-channel PReLU
# ----------------------------------------------------------------------------
def _bn_prelu_kernel(y_ref, scale_ref, shift_ref, alpha_ref, out_ref):
    c = out_ref.shape[3]
    y = y_ref[...].astype(jnp.float32)
    y = y * scale_ref[...].reshape(1, 1, 1, c) + shift_ref[...].reshape(1, 1, 1, c)
    out_ref[...] = jnp.where(y >= 0.0, y, alpha_ref[...].reshape(1, 1, 1, c) * y)


# ----------------------------------------------------------------------------
# Wrapper
# ----------------------------------------------------------------------------
def convblock_forward(x, conv_w, gamma, beta, alpha, *, eps=1e-5, tile_h=None):
    """ConvBlock forward.  x: [N, C_in, H, W] (NCHW) -> [N, C_out, H, W]."""
    n, c_in, h, w = x.shape
    c_out = conv_w.shape[0]
    c_out_p = _round_up(c_out, _LANES)
    vmem_limit = _vmem_limit_bytes()

    if tile_h is None:
        tile_h = _pick_tile_h(h, w, c_in, c_out_p, vmem_limit)
    # TODO(synk): remainder row-blocks are not handled; tile_h must divide H.
    assert h % tile_h == 0, "tile_h must divide H"
    num_hb = h // tile_h
    m_total = n * h * w

    # NHWC + 1-pixel halo, bf16 (halved DMA bytes, bf16 MXU inputs).  This is
    # one XLA transpose/pad copy; the overlapping-halo gather copy is gone.
    # TODO(synk): keep the surrounding network NHWC end-to-end to drop this
    # transpose and the final NCHW transpose.
    x_nhwc = jnp.transpose(x, (0, 2, 3, 1)).astype(jnp.bfloat16)
    xp = jnp.pad(x_nhwc, ((0, 0), (1, 1), (1, 1), (0, 0)))

    # Whole padded sample stays resident next to the conv-out blocks.
    # TODO(synk): very large images need a manual halo-row double-buffer
    # (pltpu.make_async_copy) instead of the resident-image block.
    img_bytes = (h + 2) * _round_up(w + 2, 16) * _round_up(c_in, _LANES) * 2
    assert 2 * img_bytes < vmem_limit // 2, "padded sample too large for VMEM"

    # Weights OIHW -> [(ky,kx,C_in), C_out_p]: tap-major rows matching the
    # kernel's im2col concatenation order; lane-padded, bf16.
    w2d = jnp.transpose(conv_w, (2, 3, 1, 0)).reshape(9 * c_in, c_out)
    w2d = jnp.pad(w2d, ((0, 0), (0, c_out_p - c_out))).astype(jnp.bfloat16)

    flops = 2 * m_total * 9 * c_in * c_out_p
    bytes_accessed = (xp.size * 2 + w2d.size * 2
                      + m_total * c_out_p * 2 + 2 * n * num_hb * c_out_p * 4)

    conv_out, ch_sum, ch_m2 = pl.pallas_call(
        _conv_stats_kernel,
        out_shape=(
            jax.ShapeDtypeStruct((n, h, w, c_out_p), jnp.bfloat16),
            jax.ShapeDtypeStruct((n, num_hb, 1, c_out_p), jnp.float32),
            jax.ShapeDtypeStruct((n, num_hb, 1, c_out_p), jnp.float32),
        ),
        grid=(n, num_hb),
        in_specs=[
            pl.BlockSpec((1, h + 2, w + 2, c_in), lambda ni, hb: (ni, 0, 0, 0)),
            pl.BlockSpec((9 * c_in, c_out_p), lambda ni, hb: (0, 0)),
        ],
        out_specs=[
            pl.BlockSpec((1, tile_h, w, c_out_p), lambda ni, hb: (ni, hb, 0, 0)),
            pl.BlockSpec((1, 1, 1, c_out_p), lambda ni, hb: (ni, hb, 0, 0)),
            pl.BlockSpec((1, 1, 1, c_out_p), lambda ni, hb: (ni, hb, 0, 0)),
        ],
        compiler_params=pltpu.CompilerParams(
            dimension_semantics=("parallel", "parallel"),
            vmem_limit_bytes=vmem_limit),
        cost_estimate=pl.CostEstimate(flops=flops, transcendentals=0,
                                      bytes_accessed=bytes_accessed),
    )(xp, w2d)

    # Tiny epilogue: stable cross-tile combine of per-tile centered stats,
    # then fold BN into one per-channel scale/shift.
    cnt = jnp.float32(tile_h * w)
    total = jnp.float32(m_total)
    s_all = ch_sum.reshape(-1, c_out_p)
    m2_all = ch_m2.reshape(-1, c_out_p)
    mean = jnp.sum(s_all, axis=0) / total
    mu_i = s_all / cnt
    var = (jnp.sum(m2_all, axis=0)
           + jnp.sum(cnt * (mu_i - mean) ** 2, axis=0)) / total
    var = jnp.maximum(var, 0.0)
    inv = jax.lax.rsqrt(var + eps)
    # TODO(synk): BatchNorm2d running_mean/running_var buffer updates
    # (training-state side effects) are not produced by this pure forward.
    gamma_p = jnp.pad(gamma.astype(jnp.float32), (0, c_out_p - c_out))
    beta_p = jnp.pad(beta.astype(jnp.float32), (0, c_out_p - c_out))
    alpha_p = jnp.pad(alpha.astype(jnp.float32), (0, c_out_p - c_out))
    scale = (gamma_p * inv).reshape(1, c_out_p)
    shift = (beta_p - mean * gamma_p * inv).reshape(1, c_out_p)
    alpha_p = alpha_p.reshape(1, c_out_p)

    # Pass 2: affine + PReLU.  f32 output to match the module's dtype.
    # TODO(synk): emit bf16 here (and skip lane padding when C_out % 128 == 0)
    # if the downstream consumer tolerates it.
    out_p = pl.pallas_call(
        _bn_prelu_kernel,
        out_shape=jax.ShapeDtypeStruct((n, h, w, c_out_p), jnp.float32),
        grid=(n, num_hb),
        in_specs=[
            pl.BlockSpec((1, tile_h, w, c_out_p), lambda ni, hb: (ni, hb, 0, 0)),
            pl.BlockSpec((1, c_out_p), lambda ni, hb: (0, 0)),
            pl.BlockSpec((1, c_out_p), lambda ni, hb: (0, 0)),
            pl.BlockSpec((1, c_out_p), lambda ni, hb: (0, 0)),
        ],
        out_specs=pl.BlockSpec((1, tile_h, w, c_out_p),
                               lambda ni, hb: (ni, hb, 0, 0)),
        compiler_params=pltpu.CompilerParams(
            dimension_semantics=("parallel", "parallel"),
            vmem_limit_bytes=vmem_limit),
    )(conv_out, scale, shift, alpha_p)

    out = out_p[..., :c_out]                               # NHWC, unpadded
    return jnp.transpose(out, (0, 3, 1, 2))                # NCHW (module API)


# ----------------------------------------------------------------------------
# Pure-JAX reference (sanity check)
# ----------------------------------------------------------------------------
def convblock_reference(x, conv_w, gamma, beta, alpha, *, eps=1e-5):
    y = jax.lax.conv_general_dilated(
        x, conv_w, window_strides=(1, 1), padding=((1, 1), (1, 1)),
        dimension_numbers=("NCHW", "OIHW", "NCHW"))
    mean = jnp.mean(y, axis=(0, 2, 3), keepdims=True)
    var = jnp.mean((y - mean) ** 2, axis=(0, 2, 3), keepdims=True)
    y = (y - mean) * jax.lax.rsqrt(var + eps)
    y = y * gamma.reshape(1, -1, 1, 1) + beta.reshape(1, -1, 1, 1)
    a = alpha.reshape(1, -1, 1, 1)
    return jnp.where(y >= 0.0, y, a * y)


if __name__ == "__main__":
    # ConvBlock(in_channels=4, out_channels=8, kernel_size=3, stride=1,
    #           padding=1), use_bn=True (no conv bias), discriminator=False
    #           (per-channel PReLU), use_act=True.
    N, C_IN, C_OUT, H, W = 2, 4, 8, 16, 16

    key = jax.random.PRNGKey(0)
    kx_, kw_ = jax.random.split(key)
    x = jax.random.normal(kx_, (N, C_IN, H, W), dtype=jnp.float32)
    conv_w = 0.1 * jax.random.normal(kw_, (C_OUT, C_IN, 3, 3), dtype=jnp.float32)
    gamma = jnp.ones((C_OUT,), jnp.float32)            # BatchNorm2d defaults
    beta = jnp.zeros((C_OUT,), jnp.float32)
    alpha = jnp.full((C_OUT,), 0.25, jnp.float32)      # PReLU default init

    # tile_h=8 -> 2 row-blocks per image, exercising the in-kernel halo slice
    # and the cross-tile BN-stat combine.
    out = convblock_forward(x, conv_w, gamma, beta, alpha, tile_h=8)
    out = jax.block_until_ready(out)

    ref = convblock_reference(x, conv_w, gamma, beta, alpha)
    assert out.shape == (N, C_OUT, H, W)
    assert out.dtype == jnp.float32
    # bf16 matmul inputs + bf16 conv intermediate (f32 stats / BN / PReLU)
    # -> loose tolerance.
    assert jnp.allclose(out, ref, atol=5e-2, rtol=5e-2)

    print("KERNEL_OK")
</pallas_src>

<mosaic_0001>
module attributes {stable_mosaic.version = 11 : i64} {
  func.func @_conv_stats_kernel(%arg0: i32, %arg1: i32, %arg2: memref<1x18x18x4xbf16, #tpu.memory_space<vmem>>, %arg3: memref<36x128xbf16, #tpu.memory_space<vmem>>, %arg4: memref<1x8x16x128xbf16, #tpu.memory_space<vmem>>, %arg5: memref<1x1x1x128xf32, #tpu.memory_space<vmem>>, %arg6: memref<1x1x1x128xf32, #tpu.memory_space<vmem>>) attributes {dimension_semantics = [#tpu.dimension_semantics<parallel>, #tpu.dimension_semantics<parallel>], iteration_bounds = array<i64: 2, 2>, scalar_prefetch = 0 : i64, scratch_operands = 0 : i64, tpu.core_type = #tpu.core_type<tc>, window_params = [{transform_indices = @transform_0, window_bounds = array<i64: 1, 18, 18, 4>}, {pipeline_mode = #tpu.pipeline_mode<synchronous>, transform_indices = @transform_1, window_bounds = array<i64: 36, 128>}, {transform_indices = @transform_2, window_bounds = array<i64: 1, 8, 16, 128>}, {transform_indices = @transform_3, window_bounds = array<i64: 1, 1, 1, 128>}, {transform_indices = @transform_4, window_bounds = array<i64: 1, 1, 1, 128>}]} {
    %c8_i32 = arith.constant 8 : i32
    %0 = arith.muli %arg1, %c8_i32 : i32
    %1 = tpu.assume_multiple %0, 8 : i32
    %c0 = arith.constant 0 : index
    %2 = arith.index_cast %1 : i32 to index
    %c0_0 = arith.constant 0 : index
    %c0_1 = arith.constant 0 : index
    %3 = vector.load %arg2[%c0, %2, %c0_0, %c0_1] : memref<1x18x18x4xbf16, #tpu.memory_space<vmem>>, vector<1x10x18x4xbf16>
    %4 = vector.shape_cast %3 : vector<1x10x18x4xbf16> to vector<10x18x4xbf16>
    %5 = vector.extract_strided_slice %4 {offsets = [0, 0, 0], sizes = [8, 16, 4], strides = [1, 1, 1]} : vector<10x18x4xbf16> to vector<8x16x4xbf16>
    %6 = vector.extract_strided_slice %4 {offsets = [0, 1, 0], sizes = [8, 16, 4], strides = [1, 1, 1]} : vector<10x18x4xbf16> to vector<8x16x4xbf16>
    %7 = vector.extract_strided_slice %4 {offsets = [0, 2, 0], sizes = [8, 16, 4], strides = [1, 1, 1]} : vector<10x18x4xbf16> to vector<8x16x4xbf16>
    %8 = vector.extract_strided_slice %4 {offsets = [1, 0, 0], sizes = [8, 16, 4], strides = [1, 1, 1]} : vector<10x18x4xbf16> to vector<8x16x4xbf16>
    %9 = vector.extract_strided_slice %4 {offsets = [1, 1, 0], sizes = [8, 16, 4], strides = [1, 1, 1]} : vector<10x18x4xbf16> to vector<8x16x4xbf16>
    %10 = vector.extract_strided_slice %4 {offsets = [1, 2, 0], sizes = [8, 16, 4], strides = [1, 1, 1]} : vector<10x18x4xbf16> to vector<8x16x4xbf16>
    %11 = vector.extract_strided_slice %4 {offsets = [2, 0, 0], sizes = [8, 16, 4], strides = [1, 1, 1]} : vector<10x18x4xbf16> to vector<8x16x4xbf16>
    %12 = vector.extract_strided_slice %4 {offsets = [2, 1, 0], sizes = [8, 16, 4], strides = [1, 1, 1]} : vector<10x18x4xbf16> to vector<8x16x4xbf16>
    %13 = vector.extract_strided_slice %4 {offsets = [2, 2, 0], sizes = [8, 16, 4], strides = [1, 1, 1]} : vector<10x18x4xbf16> to vector<8x16x4xbf16>
    %14 = tpu.concatenate %5, %6, %7, %8, %9, %10, %11, %12, %13 in 2 : vector<8x16x4xbf16>, vector<8x16x4xbf16>, vector<8x16x4xbf16>, vector<8x16x4xbf16>, vector<8x16x4xbf16>, vector<8x16x4xbf16>, vector<8x16x4xbf16>, vector<8x16x4xbf16>, vector<8x16x4xbf16> -> vector<8x16x36xbf16>
    %15 = vector.shape_cast %14 : vector<8x16x36xbf16> to vector<128x36xbf16>
    %c0_2 = arith.constant 0 : index
    %c0_3 = arith.constant 0 : index
    %16 = vector.load %arg3[%c0_2, %c0_3] : memref<36x128xbf16, #tpu.memory_space<vmem>>, vector<36x128xbf16>
    %cst = arith.constant dense<0.000000e+00> : vector<128x128xf32>
    %17 = tpu.matmul %15, %16, %cst {dimension_numbers = #tpu.dot_dimension_numbers<[1], [0], [0], [1], [0, 0, 1, 1], [], []>} : vector<128x36xbf16>, vector<36x128xbf16>, vector<128x128xf32> -> vector<128x128xf32>
    %18 = arith.truncf %17 : vector<128x128xf32> to vector<128x128xbf16>
    %19 = vector.shape_cast %18 : vector<128x128xbf16> to vector<1x8x16x128xbf16>
    %c0_4 = arith.constant 0 : index
    %c0_5 = arith.constant 0 : index
    %c0_6 = arith.constant 0 : index
    %c0_7 = arith.constant 0 : index
    %20 = vector.load %arg4[%c0_4, %c0_5, %c0_6, %c0_7] : memref<1x8x16x128xbf16, #tpu.memory_space<vmem>>, vector<1x8x16x128xbf16>
    tpu.vector_store %arg4[%c0_4, %c0_5, %c0_6, %c0_7], %19 {strides = array<i32>} : memref<1x8x16x128xbf16, #tpu.memory_space<vmem>>, vector<1x8x16x128xbf16>,
    %cst_8 = arith.constant dense<0.000000e+00> : vector<128xf32>
    %21 = vector.multi_reduction <add>, %17, %cst_8 [0] : vector<128x128xf32> to vector<128xf32>
    %22 = vector.shape_cast %21 : vector<128xf32> to vector<1x128xf32>
    %cst_9 = arith.constant 7.812500e-03 : f32
    %23 = vector.broadcast %cst_9 : f32 to vector<1x128xf32>
    %24 = arith.mulf %22, %23 : vector<1x128xf32>
    %25 = vector.broadcast %24 : vector<1x128xf32> to vector<128x128xf32>
    %26 = arith.subf %17, %25 : vector<128x128xf32>
    %27 = arith.mulf %26, %26 : vector<128x128xf32>
    %cst_10 = arith.constant dense<0.000000e+00> : vector<128xf32>
    %28 = vector.multi_reduction <add>, %27, %cst_10 [0] : vector<128x128xf32> to vector<128xf32>
    %29 = vector.shape_cast %28 : vector<128xf32> to vector<1x128xf32>
    %30 = vector.shape_cast %22 : vector<1x128xf32> to vector<1x1x1x128xf32>
    %c0_11 = arith.constant 0 : index
    %c0_12 = arith.constant 0 : index
    %c0_13 = arith.constant 0 : index
    %c0_14 = arith.constant 0 : index
    %31 = vector.load %arg5[%c0_11, %c0_12, %c0_13, %c0_14] : memref<1x1x1x128xf32, #tpu.memory_space<vmem>>, vector<1x1x1x128xf32>
    tpu.vector_store %arg5[%c0_11, %c0_12, %c0_13, %c0_14], %30 {strides = array<i32>} : memref<1x1x1x128xf32, #tpu.memory_space<vmem>>, vector<1x1x1x128xf32>,
    %32 = vector.shape_cast %29 : vector<1x128xf32> to vector<1x1x1x128xf32>
    %c0_15 = arith.constant 0 : index
    %c0_16 = arith.constant 0 : index
    %c0_17 = arith.constant 0 : index
    %c0_18 = arith.constant 0 : index
    %33 = vector.load %arg6[%c0_15, %c0_16, %c0_17, %c0_18] : memref<1x1x1x128xf32, #tpu.memory_space<vmem>>, vector<1x1x1x128xf32>
    tpu.vector_store %arg6[%c0_15, %c0_16, %c0_17, %c0_18], %32 {strides = array<i32>} : memref<1x1x1x128xf32, #tpu.memory_space<vmem>>, vector<1x1x1x128xf32>,
    return
  }
  func.func @transform_0(%arg0: i32, %arg1: i32) -> (i32, i32, i32, i32) {
    %c0_i32 = arith.constant 0 : i32
    %c0_i32_0 = arith.constant 0 : i32
    %c0_i32_1 = arith.constant 0 : i32
    %c0_i32_2 = arith.constant 0 : i32
    return %arg0, %c0_i32, %c0_i32_0, %c0_i32_1 : i32, i32, i32, i32
  }
  func.func @transform_1(%arg0: i32, %arg1: i32) -> (i32, i32) {
    %c0_i32 = arith.constant 0 : i32
    %c0_i32_0 = arith.constant 0 : i32
    %c0_i32_1 = arith.constant 0 : i32
    return %c0_i32, %c0_i32_0 : i32, i32
  }
  func.func @transform_2(%arg0: i32, %arg1: i32) -> (i32, i32, i32, i32) {
    %c0_i32 = arith.constant 0 : i32
    %c0_i32_0 = arith.constant 0 : i32
    %c0_i32_1 = arith.constant 0 : i32
    return %arg0, %arg1, %c0_i32, %c0_i32_0 : i32, i32, i32, i32
  }
  func.func @transform_3(%arg0: i32, %arg1: i32) -> (i32, i32, i32, i32) {
    %c0_i32 = arith.constant 0 : i32
    %c0_i32_0 = arith.constant 0 : i32
    %c0_i32_1 = arith.constant 0 : i32
    return %arg0, %arg1, %c0_i32, %c0_i32_0 : i32, i32, i32, i32
  }
  func.func @transform_4(%arg0: i32, %arg1: i32) -> (i32, i32, i32, i32) {
    %c0_i32 = arith.constant 0 : i32
    %c0_i32_0 = arith.constant 0 : i32
    %c0_i32_1 = arith.constant 0 : i32
    return %arg0, %arg1, %c0_i32, %c0_i32_0 : i32, i32, i32, i32
  }
}

</mosaic_0001>

<llo_original>
// kernel: tpu_custom_call.1
$region0: #{tpu_custom_call.1}
  #allocation0 [shape = 'u32[]', space=smem, size = 0x4, offset = 0x4, fixed_abs, tag = 'smem constant byte address 0x4 - core index']
  #allocation1 [shape = 'u32[72,128]{1,0:T(1,128)}', space=vmem, size = 0x9000, scoped, tag = 'internal scratch']
  %s0 = inlined_call_operand.vmem [shape: bf16[2,18,18,4], index: 0, kind: input, shape index: {}]
  %s1 = inlined_call_operand.vmem [shape: bf16[36,128], index: 1, kind: input, shape index: {}]
  %s2 = inlined_call_operand.hbm [shape: bf16[2,16,16,128], index: 2, kind: output, shape index: {0}]
  %s3 = inlined_call_operand.hbm [shape: f32[2,2,1,128], index: 3, kind: output, shape index: {1}]
  %s4 = inlined_call_operand.hbm [shape: f32[2,2,1,128], index: 4, kind: output, shape index: {2}]
  %5 = xla_tuple %s2, %s3, %s4
  %s6 = sld [smem:[#allocation0]]
  $region57: #{tpu_custom_call.1} parent=0
    _
  %s8 = ssub.s32 1, %s6
  %s9 = scalar_select 0, %s8, %s6
  $region1: #{tpu_custom_call.1} parent=0
    #allocation2 [shape = 'u8[65536]{0}', space=vmem, size = 0x10000, scoped, tag = 'output window, operand 0']
    #allocation3 [shape = 's32[2]{0}', space=sflag, size = 0x8, scoped, tag = 'scoped memory for tpu_custom_call.1']
    #allocation4 [shape = 'u8[1024]{0}', space=vmem, size = 0x400, scoped, tag = 'output window, operand 1']
    #allocation5 [shape = 's32[2]{0}', space=sflag, size = 0x8, scoped, tag = 'scoped memory for tpu_custom_call.1']
    #allocation6 [shape = 'u8[1024]{0}', space=vmem, size = 0x400, scoped, tag = 'output window, operand 2']
    %10 = vsyncpa [#allocation3], 0
    %s11 = scalar_lea.sflag [#allocation3], 1
    %12 = vsyncpa %s11, 0
    %13 = vsyncpa [#allocation5], 0
    %s14 = scalar_lea.sflag [#allocation5], 1
    %15 = vsyncpa %s14, 0
    loop: start=0, step=1, limit=6
    $region2: #{tpu_custom_call.1} parent=1 // loop_pre_header
      _
    $region3: #{tpu_custom_call.1} parent=1 // loop_header
      %s17 = sphi 0, %s21
      %p18 = scmp.ge.s32.totalorder %s17, 6
      %s24 = sphi 0, %s36
      %s25 = sphi 0, %s32
      %s26 = sphi 0, %s24
      %s27 = sphi 0, %s25
      %s28 = sphi 0, %s26
      %s29 = sphi 0, %s27
      %s39 = sphi 0, %s41
      %s42 = sphi 0, %s39
      %s43 = sphi 0, %s42
      %s59 = sphi 0, %s43
      %s63 = sphi 0, %s63
      %s65 = sphi 0, %s63
      %s66 = sphi 0, %s65
      %s80 = sphi 0, %s66
      %s88 = sphi 0, %s90
      %s91 = sphi 0, %s88
      %s92 = sphi 0, %s91
      %s108 = sphi 0, %s92
      %s116 = sphi 0, %s118
      %s119 = sphi 0, %s116
      %s120 = sphi 0, %s119
      %s136 = sphi 0, %s120
      %s144 = sphi 0, %s146
      %s147 = sphi 0, %s144
      %s148 = sphi 0, %s147
      %s164 = sphi 0, %s148
    $region4: #{tpu_custom_call.1} parent=1 // loop_header_branch
      %20 = sbr.rel (%p18) target = $region8
    $region5: #{tpu_custom_call.1} parent=1 // loop_body
      %s22 = ssub.s32 %s17, 1
      %s23 = ssub.s32 %s17, 2
      %s30 = sadd.s32 1, %s25
      %p31 = scmp.ge.s32.totalorder %s30, 2
      %s32 = scalar_select %p31, 0, %s30
      %s33 = sadd.s32 1, %s24
      %s34 = scalar_select %p31, %s33, %s24
      %p35 = scmp.ge.s32.totalorder %s34, 2
      %s36 = scalar_select %p35, 0, %s34
      %s37 = ssub.s32 %s24, %s36
      %p38 = scmp.eq.s32.totalorder %s37, 0
      %s40 = sadd.s32 %s39, 1
      %s41 = scalar_select %p38, %s39, %s40
      %p44 = pneg %p38
      %p45 = scmp.eq.s32.totalorder %s17, 3
      %p46 = por %p44, %p45
      %p47 = scmp.ne.s32.totalorder %s39, %s42
      %p48 = scmp.eq.s32.totalorder %s17, 0
      %p49 = por %p47, %p48
      %p50 = scmp.ne.s32.totalorder %s39, %s42
      %p51 = scmp.eq.s32.totalorder %s22, 3
      %p52 = por %p50, %p51
      %p53 = scmp.ne.s32.totalorder %s42, %s43
      %p54 = scmp.eq.s32.totalorder %s22, 0
      %p55 = por %p53, %p54
      %p56 = scmp.ne.s32.totalorder %s42, %s43
      %p57 = scmp.eq.s32.totalorder %s23, 3
      %p58 = por %p56, %p57
      %p60 = scmp.ne.s32.totalorder %s43, %s59
      %p61 = scmp.eq.s32.totalorder %s23, 0
      %p62 = por %p60, %p61
      %s64 = sadd.s32 %s63, 1
      %p67 = scmp.eq.s32.totalorder %s17, 3
      %p68 = scmp.ne.s32.totalorder %s63, %s65
      %p69 = scmp.eq.s32.totalorder %s17, 0
      %p70 = por %p68, %p69
      %p71 = scmp.ne.s32.totalorder %s63, %s65
      %p72 = scmp.eq.s32.totalorder %s22, 3
      %p73 = por %p71, %p72
      %p74 = scmp.ne.s32.totalorder %s65, %s66
      %p75 = scmp.eq.s32.totalorder %s22, 0
      %p76 = por %p74, %p75
      %p77 = scmp.ne.s32.totalorder %s65, %s66
      %p78 = scmp.eq.s32.totalorder %s23, 3
      %p79 = por %p77, %p78
      %p81 = scmp.ne.s32.totalorder %s66, %s80
      %p82 = scmp.eq.s32.totalorder %s23, 0
      %p83 = por %p81, %p82
      %s84 = ssub.s32 %s24, %s36
      %s85 = ssub.s32 %s25, %s32
      %s86 = sor.u32 %s84, %s85
      %p87 = scmp.eq.s32.totalorder %s86, 0
      %s89 = sadd.s32 %s88, 1
      %s90 = scalar_select %p87, %s88, %s89
      %p93 = pneg %p87
      %p94 = scmp.eq.s32.totalorder %s17, 3
      %p95 = por %p93, %p94
      %p96 = scmp.ne.s32.totalorder %s88, %s91
      %p97 = scmp.eq.s32.totalorder %s17, 0
      %p98 = por %p96, %p97
      %p99 = scmp.ne.s32.totalorder %s88, %s91
      %p100 = scmp.eq.s32.totalorder %s22, 3
      %p101 = por %p99, %p100
      %p102 = scmp.ne.s32.totalorder %s91, %s92
      %p103 = scmp.eq.s32.totalorder %s22, 0
      %p104 = por %p102, %p103
      %p105 = scmp.ne.s32.totalorder %s91, %s92
      %p106 = scmp.eq.s32.totalorder %s23, 3
      %p107 = por %p105, %p106
      %p109 = scmp.ne.s32.totalorder %s92, %s108
      %p110 = scmp.eq.s32.totalorder %s23, 0
      %p111 = por %p109, %p110
      %s112 = ssub.s32 %s24, %s36
      %s113 = ssub.s32 %s25, %s32
      %s114 = sor.u32 %s112, %s113
      %p115 = scmp.eq.s32.totalorder %s114, 0
      %s117 = sadd.s32 %s116, 1
      %s118 = scalar_select %p115, %s116, %s117
      %p121 = pneg %p115
      %p122 = scmp.eq.s32.totalorder %s17, 3
      %p123 = por %p121, %p122
      %p124 = scmp.ne.s32.totalorder %s116, %s119
      %p125 = scmp.eq.s32.totalorder %s17, 0
      %p126 = por %p124, %p125
      %p127 = scmp.ne.s32.totalorder %s116, %s119
      %p128 = scmp.eq.s32.totalorder %s22, 3
      %p129 = por %p127, %p128
      %p130 = scmp.ne.s32.totalorder %s119, %s120
      %p131 = scmp.eq.s32.totalorder %s22, 0
      %p132 = por %p130, %p131
      %p133 = scmp.ne.s32.totalorder %s119, %s120
      %p134 = scmp.eq.s32.totalorder %s23, 3
      %p135 = por %p133, %p134
      %p137 = scmp.ne.s32.totalorder %s120, %s136
      %p138 = scmp.eq.s32.totalorder %s23, 0
      %p139 = por %p137, %p138
      %s140 = ssub.s32 %s24, %s36
      %s141 = ssub.s32 %s25, %s32
      %s142 = sor.u32 %s140, %s141
      %p143 = scmp.eq.s32.totalorder %s142, 0
      %s145 = sadd.s32 %s144, 1
      %s146 = scalar_select %p143, %s144, %s145
      %p149 = pneg %p143
      %p150 = scmp.eq.s32.totalorder %s17, 3
      %p151 = por %p149, %p150
      %p152 = scmp.ne.s32.totalorder %s144, %s147
      %p153 = scmp.eq.s32.totalorder %s17, 0
      %p154 = por %p152, %p153
      %p155 = scmp.ne.s32.totalorder %s144, %s147
      %p156 = scmp.eq.s32.totalorder %s22, 3
      %p157 = por %p155, %p156
      %p158 = scmp.ne.s32.totalorder %s147, %s148
      %p159 = scmp.eq.s32.totalorder %s22, 0
      %p160 = por %p158, %p159
      %p161 = scmp.ne.s32.totalorder %s147, %s148
      %p162 = scmp.eq.s32.totalorder %s23, 3
      %p163 = por %p161, %p162
      %p165 = scmp.ne.s32.totalorder %s148, %s164
      %p166 = scmp.eq.s32.totalorder %s23, 0
      %p167 = por %p165, %p166
      %p168 = scmp.le.s32.totalorder 1, %s17
      %p169 = scmp.lt.s32.totalorder %s17, 5
      %p170 = pnand %p168, %p169
      %p171 = pneg %p170
      // Predicated region
      $region9: #{tpu_custom_call.1} parent=5 // pred_check
        _
      $region10: #{tpu_custom_call.1} parent=5 // pred_check_branch
        %173 = sbr.rel (%p170) target = $region12
      $region11: #{tpu_custom_call.1} parent=5 // pred_region
        %s174 = ssub.s32 %s17, 1
        // Predicated region
        $region13: #{tpu_custom_call.1} parent=11 // pred_check
          %p175 = pneg %p76
        $region14: #{tpu_custom_call.1} parent=11 // pred_check_branch
          %177 = sbr.rel (%p175) target = $region16
        $region15: #{tpu_custom_call.1} parent=11 // pred_region
          _
        $region16: #{tpu_custom_call.1} parent=11 // pred_fallthru
          _
      $region12: #{tpu_custom_call.1} parent=5 // pred_fallthru
        _
      %p178 = scmp.lt.s32.totalorder %s17, 4
      // Predicated region
      $region17: #{tpu_custom_call.1} parent=5 // pred_check
        %p179 = pneg %p178
      $region18: #{tpu_custom_call.1} parent=5 // pred_check_branch
        %181 = sbr.rel (%p179) target = $region20
      $region19: #{tpu_custom_call.1} parent=5 // pred_region
        // Predicated region
        $region21: #{tpu_custom_call.1} parent=19 // pred_check
          %p182 = pneg %p49
        $region22: #{tpu_custom_call.1} parent=19 // pred_check_branch
          %184 = sbr.rel (%p182) target = $region24
        $region23: #{tpu_custom_call.1} parent=19 // pred_region
          %p185 = scmp.lt.s32.totalorder %s24, 1
          %s186 = scalar_select %p185, %s24, 1
          %s187 = smul.addr %s186, 54
          %s188 = smul.addr %s187, 4
          %s189 = scalar_lea.vmem %s0, %s188
        $region24: #{tpu_custom_call.1} parent=19 // pred_fallthru
          _
      $region20: #{tpu_custom_call.1} parent=5 // pred_fallthru
        _
      %p190 = scmp.le.s32.totalorder 1, %s17
      %p191 = scmp.lt.s32.totalorder %s17, 5
      %p192 = pnand %p190, %p191
      %p193 = pneg %p192
      // Predicated region
      $region25: #{tpu_custom_call.1} parent=5 // pred_check
        _
      $region26: #{tpu_custom_call.1} parent=5 // pred_check_branch
        %195 = sbr.rel (%p192) target = $region28
      $region27: #{tpu_custom_call.1} parent=5 // pred_region
        %s196 = ssub.s32 %s17, 1
        %p197 = scmp.lt.s32.totalorder %s26, 1
        %s198 = scalar_select %p197, %s26, 1
        %s199 = smul.addr %s198, 54
        %s200 = smul.addr %s199, 4
        %s201 = scalar_lea.vmem %s0, %s200
        %p202 = pneg %p55
        %p203 = pneg %p52
        %p204 = pneg %p76
        %p205 = pneg %p73
        %p206 = pneg %p104
        %p207 = pneg %p101
        %s208 = sand.u32 %s91, 1
        %s209 = scalar_lea.sflag [#allocation3], %s208
        %s210 = sand.u32 %s91, 1
        %s211 = smul.addr %s210, 64
        %s212 = scalar_lea.vmem [#allocation2], %s211
        %p213 = pneg %p132
        %p214 = pneg %p129
        %s215 = sand.u32 %s22, 1
        %s216 = scalar_lea.sflag [#allocation5], %s215
        %s217 = sand.u32 %s119, 1
        %s218 = scalar_lea.vmem [#allocation4], %s217
        %p219 = pneg %p160
        %p220 = pneg %p157
        %s221 = sand.u32 %s22, 1
        %s222 = scalar_lea.sflag [#allocation5], %s221
        %s223 = sand.u32 %s147, 1
        %s224 = scalar_lea.vmem [#allocation6], %s223
        %p225 = scmp.lt.s32.totalorder %s26, 1
        %s226 = scalar_select %p225, %s26, 1
        %s227 = smul.addr %s226, 54
        %s228 = smul.addr %s227, 4
        %s229 = scalar_lea.vmem %s0, %s228
        %s230 = smul.u32 8, %s27
        %s232 = smul.u32 %s27, 8
        %s233 = smul.u32 %s232, 3
        %s234 = smul.addr %s233, 4
        %s235 = scalar_lea.vmem %s229, %s234
        %v236 = vld [vmem:[%s235] sm:$0xf]
        %v237 = vld [vmem:[%s235 + $0x4] sm:$0xf]
        %v238 = vld [vmem:[%s235 + $0x8] sm:$0x1]
        %v239 = vld [vmem:[%s235 + $0xc] sm:$0xf]
        %v240 = vld [vmem:[%s235 + $0x10] sm:$0xf]
        %v241 = vld [vmem:[%s235 + $0x14] sm:$0x1]
        %v242 = vld [vmem:[%s235 + $0x18] sm:$0xf]
        %v243 = vld [vmem:[%s235 + $0x1c] sm:$0xf]
        %v244 = vld [vmem:[%s235 + $0x20] sm:$0x1]
        %v245 = vld [vmem:[%s235 + $0x24] sm:$0xf]
        %v246 = vld [vmem:[%s235 + $0x28] sm:$0xf]
        %v247 = vld [vmem:[%s235 + $0x2c] sm:$0x1]
        %v248 = vld [vmem:[%s235 + $0x30] sm:$0xf]
        %v249 = vld [vmem:[%s235 + $0x34] sm:$0xf]
        %v250 = vld [vmem:[%s235 + $0x38] sm:$0x1]
        %v251 = vld [vmem:[%s235 + $0x3c] sm:$0xf]
        %v252 = vld [vmem:[%s235 + $0x40] sm:$0xf]
        %v253 = vld [vmem:[%s235 + $0x44] sm:$0x1]
        %v254 = vld [vmem:[%s235 + $0x48] sm:$0xf]
        %v255 = vld [vmem:[%s235 + $0x4c] sm:$0xf]
        %v256 = vld [vmem:[%s235 + $0x50] sm:$0x1]
        %v257 = vld [vmem:[%s235 + $0x54] sm:$0xf]
        %v258 = vld [vmem:[%s235 + $0x58] sm:$0xf]
        %v259 = vld [vmem:[%s235 + $0x5c] sm:$0x1]
        %v260 = vld [vmem:[%s235 + $0x60] sm:$0xf]
        %v261 = vld [vmem:[%s235 + $0x64] sm:$0xf]
        %v262 = vld [vmem:[%s235 + $0x68] sm:$0x1]
        %v263 = vld [vmem:[%s235 + $0x6c] sm:$0xf]
        %v264 = vld [vmem:[%s235 + $0x70] sm:$0xf]
        %v265 = vld [vmem:[%s235 + $0x74] sm:$0x1]
        %v282 = vunpack.c.l.b16 %v236
        %v283 = vunpack.c.l.b16 %v237
        %v284 = vunpack.c.l.b16 %v239
        %v285 = vunpack.c.l.b16 %v240
        %v286 = vunpack.c.l.b16 %v242
        %v287 = vunpack.c.l.b16 %v243
        %v288 = vunpack.c.l.b16 %v245
        %v289 = vunpack.c.l.b16 %v246
        %v290 = vunpack.c.l.b16 %v248
        %v291 = vunpack.c.l.b16 %v249
        %v292 = vunpack.c.l.b16 %v251
        %v293 = vunpack.c.l.b16 %v252
        %v294 = vunpack.c.l.b16 %v254
        %v295 = vunpack.c.l.b16 %v255
        %v296 = vunpack.c.l.b16 %v257
        %v297 = vunpack.c.l.b16 %v258
        %v298 = vpack.c.b16 %v283, %v282
        %v299 = vpack.c.b16 %v285, %v284
        %v300 = vpack.c.b16 %v287, %v286
        %v301 = vpack.c.b16 %v289, %v288
        %v302 = vpack.c.b16 %v291, %v290
        %v303 = vpack.c.b16 %v293, %v292
        %v304 = vpack.c.b16 %v295, %v294
        %v305 = vpack.c.b16 %v297, %v296
        %v314 = vunpack.c.l.b16 %v238
        %v315 = vunpack.c.l.b16 %v241
        %v316 = vunpack.c.l.b16 %v244
        %v317 = vunpack.c.l.b16 %v247
        %v318 = vunpack.c.l.b16 %v250
        %v319 = vunpack.c.l.b16 %v253
        %v320 = vunpack.c.l.b16 %v256
        %v321 = vunpack.c.l.b16 %v259
        %v322 = vpack.c.b16 %v314, %v314
        %v323 = vpack.c.b16 %v315, %v315
        %v324 = vpack.c.b16 %v316, %v316
        %v325 = vpack.c.b16 %v317, %v317
        %v326 = vpack.c.b16 %v318, %v318
        %v327 = vpack.c.b16 %v319, %v319
        %v328 = vpack.c.b16 %v320, %v320
        %v329 = vpack.c.b16 %v321, %v321
        %vm330 = vsmask.f32 7424
        %v332 = vshrl.u32 %v298, 16
        %v334 = vshll.u32 %v298, 16
        %v336 = vrot.slane %v334, 1
        %v337 = vor.u32 %v332, %v336
        %v339 = vshll.u32 %v322, 16
        %v341 = vrot.slane %v339, 1
        %v342 = vsel %vm330, %v337, %v341
        %v344 = vshrl.u32 %v299, 16
        %v346 = vshll.u32 %v299, 16
        %v348 = vrot.slane %v346, 1
        %v349 = vor.u32 %v344, %v348
        %v351 = vshll.u32 %v323, 16
        %v353 = vrot.slane %v351, 1
        %v354 = vsel %vm330, %v349, %v353
        %v356 = vshrl.u32 %v300, 16
        %v358 = vshll.u32 %v300, 16
        %v360 = vrot.slane %v358, 1
        %v361 = vor.u32 %v356, %v360
        %v363 = vshll.u32 %v324, 16
        %v365 = vrot.slane %v363, 1
        %v366 = vsel %vm330, %v361, %v365
        %v368 = vshrl.u32 %v301, 16
        %v370 = vshll.u32 %v301, 16
        %v372 = vrot.slane %v370, 1
        %v373 = vor.u32 %v368, %v372
        %v375 = vshll.u32 %v325, 16
        %v377 = vrot.slane %v375, 1
        %v378 = vsel %vm330, %v373, %v377
        %v380 = vshrl.u32 %v302, 16
        %v382 = vshll.u32 %v302, 16
        %v384 = vrot.slane %v382, 1
        %v385 = vor.u32 %v380, %v384
        %v387 = vshll.u32 %v326, 16
        %v389 = vrot.slane %v387, 1
        %v390 = vsel %vm330, %v385, %v389
        %v392 = vshrl.u32 %v303, 16
        %v394 = vshll.u32 %v303, 16
        %v396 = vrot.slane %v394, 1
        %v397 = vor.u32 %v392, %v396
        %v399 = vshll.u32 %v327, 16
        %v401 = vrot.slane %v399, 1
        %v402 = vsel %vm330, %v397, %v401
        %v404 = vshrl.u32 %v304, 16
        %v406 = vshll.u32 %v304, 16
        %v408 = vrot.slane %v406, 1
        %v409 = vor.u32 %v404, %v408
        %v411 = vshll.u32 %v328, 16
        %v413 = vrot.slane %v411, 1
        %v414 = vsel %vm330, %v409, %v413
        %v416 = vshrl.u32 %v305, 16
        %v418 = vshll.u32 %v305, 16
        %v420 = vrot.slane %v418, 1
        %v421 = vor.u32 %v416, %v420
        %v423 = vshll.u32 %v329, 16
        %v425 = vrot.slane %v423, 1
        %v426 = vsel %vm330, %v421, %v425
        %427 = vrot.lane.b32.xlu0 %v342, 4
        %v428 = vpop.permute.xlu0 %427
        %429 = vrot.lane.b32.xlu0 %v354, 4
        %v430 = vpop.permute.xlu0 %429
        %431 = vrot.lane.b32.xlu0 %v366, 4
        %v432 = vpop.permute.xlu0 %431
        %433 = vrot.lane.b32.xlu0 %v378, 4
        %v434 = vpop.permute.xlu0 %433
        %435 = vrot.lane.b32.xlu0 %v390, 4
        %v436 = vpop.permute.xlu0 %435
        %437 = vrot.lane.b32.xlu0 %v402, 4
        %v438 = vpop.permute.xlu0 %437
        %439 = vrot.lane.b32.xlu0 %v414, 4
        %v440 = vpop.permute.xlu0 %439
        %441 = vrot.lane.b32.xlu0 %v426, 4
        %v442 = vpop.permute.xlu0 %441
        %vm443 = vcmask 1046528
        %v444 = vrot.slane %v298, 1
        %v445 = vrot.slane %v322, 1
        %v446 = vsel %vm443, %v444, %v445
        %v447 = vrot.slane %v299, 1
        %v448 = vrot.slane %v323, 1
        %v449 = vsel %vm443, %v447, %v448
        %v450 = vrot.slane %v300, 1
        %v451 = vrot.slane %v324, 1
        %v452 = vsel %vm443, %v450, %v451
        %v453 = vrot.slane %v301, 1
        %v454 = vrot.slane %v325, 1
        %v455 = vsel %vm443, %v453, %v454
        %v456 = vrot.slane %v302, 1
        %v457 = vrot.slane %v326, 1
        %v458 = vsel %vm443, %v456, %v457
        %v459 = vrot.slane %v303, 1
        %v460 = vrot.slane %v327, 1
        %v461 = vsel %vm443, %v459, %v460
        %v462 = vrot.slane %v304, 1
        %v463 = vrot.slane %v328, 1
        %v464 = vsel %vm443, %v462, %v463
        %v465 = vrot.slane %v305, 1
        %v466 = vrot.slane %v329, 1
        %v467 = vsel %vm443, %v465, %v466
        %468 = vrot.lane.b32.xlu0 %v446, 8
        %v469 = vpop.permute.xlu0 %468
        %470 = vrot.lane.b32.xlu0 %v449, 8
        %v471 = vpop.permute.xlu0 %470
        %472 = vrot.lane.b32.xlu0 %v452, 8
        %v473 = vpop.permute.xlu0 %472
        %474 = vrot.lane.b32.xlu0 %v455, 8
        %v475 = vpop.permute.xlu0 %474
        %476 = vrot.lane.b32.xlu0 %v458, 8
        %v477 = vpop.permute.xlu0 %476
        %478 = vrot.lane.b32.xlu0 %v461, 8
        %v479 = vpop.permute.xlu0 %478
        %480 = vrot.lane.b32.xlu0 %v464, 8
        %v481 = vpop.permute.xlu0 %480
        %482 = vrot.lane.b32.xlu0 %v467, 8
        %v483 = vpop.permute.xlu0 %482
        %v486 = vunpack.c.l.b16 %v260
        %v487 = vunpack.c.l.b16 %v261
        %v488 = vpack.c.b16 %v487, %v486
        %489 = vrot.lane.b32.xlu0 %v299, 12
        %v490 = vpop.permute.xlu0 %489
        %491 = vrot.lane.b32.xlu0 %v300, 12
        %v492 = vpop.permute.xlu0 %491
        %493 = vrot.lane.b32.xlu0 %v301, 12
        %v494 = vpop.permute.xlu0 %493
        %495 = vrot.lane.b32.xlu0 %v302, 12
        %v496 = vpop.permute.xlu0 %495
        %497 = vrot.lane.b32.xlu0 %v303, 12
        %v498 = vpop.permute.xlu0 %497
        %499 = vrot.lane.b32.xlu0 %v304, 12
        %v500 = vpop.permute.xlu0 %499
        %501 = vrot.lane.b32.xlu0 %v305, 12
        %v502 = vpop.permute.xlu0 %501
        %503 = vrot.lane.b32.xlu0 %v488, 12
        %v504 = vpop.permute.xlu0 %503
        %v506 = vunpack.c.l.b16 %v262
        %v507 = vpack.c.b16 %v506, %v506
        %v509 = vshrl.u32 %v488, 16
        %v511 = vshll.u32 %v488, 16
        %v513 = vrot.slane %v511, 1
        %v514 = vor.u32 %v509, %v513
        %v516 = vshll.u32 %v507, 16
        %v518 = vrot.slane %v516, 1
        %v519 = vsel %vm330, %v514, %v518
        %520 = vrot.lane.b32.xlu0 %v354, 16
        %v521 = vpop.permute.xlu0 %520
        %522 = vrot.lane.b32.xlu0 %v366, 16
        %v523 = vpop.permute.xlu0 %522
        %524 = vrot.lane.b32.xlu0 %v378, 16
        %v525 = vpop.permute.xlu0 %524
        %526 = vrot.lane.b32.xlu0 %v390, 16
        %v527 = vpop.permute.xlu0 %526
        %528 = vrot.lane.b32.xlu0 %v402, 16
        %v529 = vpop.permute.xlu0 %528
        %530 = vrot.lane.b32.xlu0 %v414, 16
        %v531 = vpop.permute.xlu0 %530
        %532 = vrot.lane.b32.xlu0 %v426, 16
        %v533 = vpop.permute.xlu0 %532
        %534 = vrot.lane.b32.xlu0 %v519, 16
        %v535 = vpop.permute.xlu0 %534
        %v536 = vrot.slane %v488, 1
        %v537 = vrot.slane %v507, 1
        %v538 = vsel %vm443, %v536, %v537
        %539 = vrot.lane.b32.xlu0 %v449, 20
        %v540 = vpop.permute.xlu0 %539
        %541 = vrot.lane.b32.xlu0 %v452, 20
        %v542 = vpop.permute.xlu0 %541
        %543 = vrot.lane.b32.xlu0 %v455, 20
        %v544 = vpop.permute.xlu0 %543
        %545 = vrot.lane.b32.xlu0 %v458, 20
        %v546 = vpop.permute.xlu0 %545
        %547 = vrot.lane.b32.xlu0 %v461, 20
        %v548 = vpop.permute.xlu0 %547
        %549 = vrot.lane.b32.xlu0 %v464, 20
        %v550 = vpop.permute.xlu0 %549
        %551 = vrot.lane.b32.xlu0 %v467, 20
        %v552 = vpop.permute.xlu0 %551
        %553 = vrot.lane.b32.xlu0 %v538, 20
        %v554 = vpop.permute.xlu0 %553
        %v557 = vunpack.c.l.b16 %v263
        %v558 = vunpack.c.l.b16 %v264
        %v559 = vpack.c.b16 %v558, %v557
        %560 = vrot.lane.b32.xlu0 %v300, 24
        %v561 = vpop.permute.xlu0 %560
        %562 = vrot.lane.b32.xlu0 %v301, 24
        %v563 = vpop.permute.xlu0 %562
        %564 = vrot.lane.b32.xlu0 %v302, 24
        %v565 = vpop.permute.xlu0 %564
        %566 = vrot.lane.b32.xlu0 %v303, 24
        %v567 = vpop.permute.xlu0 %566
        %568 = vrot.lane.b32.xlu0 %v304, 24
        %v569 = vpop.permute.xlu0 %568
        %570 = vrot.lane.b32.xlu0 %v305, 24
        %v571 = vpop.permute.xlu0 %570
        %572 = vrot.lane.b32.xlu0 %v488, 24
        %v573 = vpop.permute.xlu0 %572
        %574 = vrot.lane.b32.xlu0 %v559, 24
        %v575 = vpop.permute.xlu0 %574
        %v577 = vunpack.c.l.b16 %v265
        %v578 = vpack.c.b16 %v577, %v577
        %v580 = vshrl.u32 %v559, 16
        %v582 = vshll.u32 %v559, 16
        %v584 = vrot.slane %v582, 1
        %v585 = vor.u32 %v580, %v584
        %v587 = vshll.u32 %v578, 16
        %v589 = vrot.slane %v587, 1
        %v590 = vsel %vm330, %v585, %v589
        %591 = vrot.lane.b32.xlu0 %v366, 28
        %v592 = vpop.permute.xlu0 %591
        %593 = vrot.lane.b32.xlu0 %v378, 28
        %v594 = vpop.permute.xlu0 %593
        %595 = vrot.lane.b32.xlu0 %v390, 28
        %v596 = vpop.permute.xlu0 %595
        %597 = vrot.lane.b32.xlu0 %v402, 28
        %v598 = vpop.permute.xlu0 %597
        %599 = vrot.lane.b32.xlu0 %v414, 28
        %v600 = vpop.permute.xlu0 %599
        %601 = vrot.lane.b32.xlu0 %v426, 28
        %v602 = vpop.permute.xlu0 %601
        %603 = vrot.lane.b32.xlu0 %v519, 28
        %v604 = vpop.permute.xlu0 %603
        %605 = vrot.lane.b32.xlu0 %v590, 28
        %v606 = vpop.permute.xlu0 %605
        %v607 = vrot.slane %v559, 1
        %v608 = vrot.slane %v578, 1
        %v609 = vsel %vm443, %v607, %v608
        %610 = vrot.lane.b32.xlu0 %v452, 32
        %v611 = vpop.permute.xlu0 %610
        %612 = vrot.lane.b32.xlu0 %v455, 32
        %v613 = vpop.permute.xlu0 %612
        %614 = vrot.lane.b32.xlu0 %v458, 32
        %v615 = vpop.permute.xlu0 %614
        %616 = vrot.lane.b32.xlu0 %v461, 32
        %v617 = vpop.permute.xlu0 %616
        %618 = vrot.lane.b32.xlu0 %v464, 32
        %v619 = vpop.permute.xlu0 %618
        %620 = vrot.lane.b32.xlu0 %v467, 32
        %v621 = vpop.permute.xlu0 %620
        %622 = vrot.lane.b32.xlu0 %v538, 32
        %v623 = vpop.permute.xlu0 %622
        %624 = vrot.lane.b32.xlu0 %v609, 32
        %v625 = vpop.permute.xlu0 %624
        %vm626 = vcmask 31744
        %v628 = vsel %vm626, %v298, %v428
        %v630 = vsel %vm626, %v299, %v430
        %v632 = vsel %vm626, %v300, %v432
        %v634 = vsel %vm626, %v301, %v434
        %v636 = vsel %vm626, %v302, %v436
        %v638 = vsel %vm626, %v303, %v438
        %v640 = vsel %vm626, %v304, %v440
        %v642 = vsel %vm626, %v305, %v442
        %vm643 = vcmask 64512
        %v645 = vsel %vm643, %v628, %v469
        %v647 = vsel %vm643, %v630, %v471
        %v649 = vsel %vm643, %v632, %v473
        %v651 = vsel %vm643, %v634, %v475
        %v653 = vsel %vm643, %v636, %v477
        %v655 = vsel %vm643, %v638, %v479
        %v657 = vsel %vm643, %v640, %v481
        %v659 = vsel %vm643, %v642, %v483
        %vm660 = vcmask 97280
        %v662 = vsel %vm660, %v645, %v490
        %v664 = vsel %vm660, %v647, %v492
        %v666 = vsel %vm660, %v649, %v494
        %v668 = vsel %vm660, %v651, %v496
        %v670 = vsel %vm660, %v653, %v498
        %v672 = vsel %vm660, %v655, %v500
        %v674 = vsel %vm660, %v657, %v502
        %v676 = vsel %vm660, %v659, %v504
        %vm677 = vcmask 130048
        %v679 = vsel %vm677, %v662, %v521
        %v681 = vsel %vm677, %v664, %v523
        %v683 = vsel %vm677, %v666, %v525
        %v685 = vsel %vm677, %v668, %v527
        %v687 = vsel %vm677, %v670, %v529
        %v689 = vsel %vm677, %v672, %v531
        %v691 = vsel %vm677, %v674, %v533
        %v693 = vsel %vm677, %v676, %v535
        %vm694 = vcmask 162816
        %v696 = vsel %vm694, %v679, %v540
        %v698 = vsel %vm694, %v681, %v542
        %v700 = vsel %vm694, %v683, %v544
        %v702 = vsel %vm694, %v685, %v546
        %v704 = vsel %vm694, %v687, %v548
        %v706 = vsel %vm694, %v689, %v550
        %v708 = vsel %vm694, %v691, %v552
        %v710 = vsel %vm694, %v693, %v554
        %vm711 = vcmask 195584
        %v713 = vsel %vm711, %v696, %v561
        %v715 = vsel %vm711, %v698, %v563
        %v717 = vsel %vm711, %v700, %v565
        %v719 = vsel %vm711, %v702, %v567
        %v721 = vsel %vm711, %v704, %v569
        %v723 = vsel %vm711, %v706, %v571
        %v725 = vsel %vm711, %v708, %v573
        %v727 = vsel %vm711, %v710, %v575
        %vm728 = vcmask 228352
        %v730 = vsel %vm728, %v713, %v592
        %v732 = vsel %vm728, %v715, %v594
        %v734 = vsel %vm728, %v717, %v596
        %v736 = vsel %vm728, %v719, %v598
        %v738 = vsel %vm728, %v721, %v600
        %v740 = vsel %vm728, %v723, %v602
        %v742 = vsel %vm728, %v725, %v604
        %v744 = vsel %vm728, %v727, %v606
        %vm745 = vcmask 261120
        %v747 = vsel %vm745, %v730, %v611
        %v749 = vsel %vm745, %v732, %v613
        %v751 = vsel %vm745, %v734, %v615
        %v753 = vsel %vm745, %v736, %v617
        %v755 = vsel %vm745, %v738, %v619
        %v757 = vsel %vm745, %v740, %v621
        %v759 = vsel %vm745, %v742, %v623
        %v761 = vsel %vm745, %v744, %v625
        %v762 = vld [vmem:[%s1] sm:$0xf]
        %v763 = vld [vmem:[%s1 + $0x4] sm:$0xf]
        %v764 = vld [vmem:[%s1 + $0x8] sm:$0xf]
        %v765 = vld [vmem:[%s1 + $0xc] sm:$0xf]
        %v766 = vld [vmem:[%s1 + $0x10] sm:$0x3]
        %v772 = vunpack.c.l.b16 %v762
        %v773 = vunpack.c.l.b16 %v763
        %v774 = vunpack.c.l.b16 %v764
        %v775 = vunpack.c.l.b16 %v765
        %v776 = vunpack.c.l.b16 %v766
        %v777 = vpack.c.b16 %v773, %v772
        %v778 = vpack.c.b16 %v775, %v774
        %v779 = vpack.c.b16 %v776, %v776
        %vm782 = vcmask 293888
        %v783 = vsel %vm782, %v747, 0
        %v785 = vsel %vm782, %v749, 0
        %v787 = vsel %vm782, %v751, 0
        %v789 = vsel %vm782, %v753, 0
        %v791 = vsel %vm782, %v755, 0
        %v793 = vsel %vm782, %v757, 0
        %v795 = vsel %vm782, %v759, 0
        %v797 = vsel %vm782, %v761, 0
        %vm799 = vcmask 1041408
        %v801 = vsel %vm799, %v779, 0
        %803 = vmatpush.bf16.msra.mxu0 0
        %804 = vmatpush.bf16.msra.mxu0 0
        %805 = vmatpush.bf16.msra.mxu0 0
        %806 = vmatpush.bf16.msra.mxu0 0
        %807 = vmatpush.bf16.msra.mxu0 0
        %808 = vmatpush.bf16.msra.mxu0 %v801
        %809 = vmatpush.bf16.msra.mxu0 %v778
        %810 = vmatpush.bf16.msra.mxu0 %v777
        %811 = vmatmul.bf16.gmra.mxu0 %v783
        %v812 = vpop.f32.mrf.mxu0
        %v813 = vadd.f32 0.0, %v812
        %v814 = vpop.f32.mrf.mxu0
        %v815 = vadd.f32 0.0, %v814
        %816 = vmatmul.bf16.gmra.mxu0 %v785
        %v817 = vpop.f32.mrf.mxu0
        %v818 = vadd.f32 0.0, %v817
        %v819 = vpop.f32.mrf.mxu0
        %v820 = vadd.f32 0.0, %v819
        %821 = vmatmul.bf16.gmra.mxu0 %v787
        %v822 = vpop.f32.mrf.mxu0
        %v823 = vadd.f32 0.0, %v822
        %v824 = vpop.f32.mrf.mxu0
        %v825 = vadd.f32 0.0, %v824
        %826 = vmatmul.bf16.gmra.mxu0 %v789
        %v827 = vpop.f32.mrf.mxu0
        %v828 = vadd.f32 0.0, %v827
        %v829 = vpop.f32.mrf.mxu0
        %v830 = vadd.f32 0.0, %v829
        %831 = vmatmul.bf16.gmra.mxu0 %v791
        %v832 = vpop.f32.mrf.mxu0
        %v833 = vadd.f32 0.0, %v832
        %v834 = vpop.f32.mrf.mxu0
        %v835 = vadd.f32 0.0, %v834
        %836 = vmatmul.bf16.gmra.mxu0 %v793
        %v837 = vpop.f32.mrf.mxu0
        %v838 = vadd.f32 0.0, %v837
        %v839 = vpop.f32.mrf.mxu0
        %v840 = vadd.f32 0.0, %v839
        %841 = vmatmul.bf16.gmra.mxu0 %v795
        %v842 = vpop.f32.mrf.mxu0
        %v843 = vadd.f32 0.0, %v842
        %v844 = vpop.f32.mrf.mxu0
        %v845 = vadd.f32 0.0, %v844
        %846 = vmatmul.bf16.gmra.mxu0 %v797
        %v847 = vpop.f32.mrf.mxu0
        %v848 = vadd.f32 0.0, %v847
        %v849 = vpop.f32.mrf.mxu0
        %v850 = vadd.f32 0.0, %v849
        %851 = vdwg.mxu0
        %v852 = vpack.c.bf16 %v813, %v813
        %v853 = vpack.c.bf16 %v815, %v815
        %v854 = vpack.c.bf16 %v818, %v818
        %v855 = vpack.c.bf16 %v820, %v820
        %v856 = vpack.c.bf16 %v823, %v823
        %v857 = vpack.c.bf16 %v825, %v825
        %v858 = vpack.c.bf16 %v828, %v828
        %v859 = vpack.c.bf16 %v830, %v830
        %v860 = vpack.c.bf16 %v833, %v833
        %v861 = vpack.c.bf16 %v835, %v835
        %v862 = vpack.c.bf16 %v838, %v838
        %v863 = vpack.c.bf16 %v840, %v840
        %v864 = vpack.c.bf16 %v843, %v843
        %v865 = vpack.c.bf16 %v845, %v845
        %v866 = vpack.c.bf16 %v848, %v848
        %v867 = vpack.c.bf16 %v850, %v850
        %868 = vst [vmem:[%s212] sm:$0xf] %v852
        %869 = vst [vmem:[%s212 + $0x4] sm:$0xf] %v853
        %870 = vst [vmem:[%s212 + $0x8] sm:$0xf] %v854
        %871 = vst [vmem:[%s212 + $0xc] sm:$0xf] %v855
        %872 = vst [vmem:[%s212 + $0x10] sm:$0xf] %v856
        %873 = vst [vmem:[%s212 + $0x14] sm:$0xf] %v857
        %874 = vst [vmem:[%s212 + $0x18] sm:$0xf] %v858
        %875 = vst [vmem:[%s212 + $0x1c] sm:$0xf] %v859
        %876 = vst [vmem:[%s212 + $0x20] sm:$0xf] %v860
        %877 = vst [vmem:[%s212 + $0x24] sm:$0xf] %v861
        %878 = vst [vmem:[%s212 + $0x28] sm:$0xf] %v862
        %879 = vst [vmem:[%s212 + $0x2c] sm:$0xf] %v863
        %880 = vst [vmem:[%s212 + $0x30] sm:$0xf] %v864
        %881 = vst [vmem:[%s212 + $0x34] sm:$0xf] %v865
        %882 = vst [vmem:[%s212 + $0x38] sm:$0xf] %v866
        %883 = vst [vmem:[%s212 + $0x3c] sm:$0xf] %v867
        %v884 = vadd.f32 %v813, %v815
        %v885 = vadd.f32 %v884, %v818
        %v886 = vadd.f32 %v885, %v820
        %v887 = vadd.f32 %v886, %v823
        %v888 = vadd.f32 %v887, %v825
        %v889 = vadd.f32 %v888, %v828
        %v890 = vadd.f32 %v889, %v830
        %v891 = vadd.f32 %v890, %v833
        %v892 = vadd.f32 %v891, %v835
        %v893 = vadd.f32 %v892, %v838
        %v894 = vadd.f32 %v893, %v840
        %v895 = vadd.f32 %v894, %v843
        %v896 = vadd.f32 %v895, %v845
        %v897 = vadd.f32 %v896, %v848
        %v898 = vadd.f32 %v897, %v850
        %v899 = vrot.slane %v898, 4
        %v900 = vadd.f32 %v898, %v899
        %v901 = vrot.slane %v900, 2
        %v902 = vadd.f32 %v900, %v901
        %v903 = vrot.slane %v902, 1
        %v904 = vadd.f32 %v902, %v903
        %v905 = vmul.f32 %v904, 0.0078125
        %v906 = vsub.f32 %v813, %v905
        %v907 = vsub.f32 %v815, %v905
        %v908 = vsub.f32 %v818, %v905
        %v909 = vsub.f32 %v820, %v905
        %v910 = vsub.f32 %v823, %v905
        %v911 = vsub.f32 %v825, %v905
        %v912 = vsub.f32 %v828, %v905
        %v913 = vsub.f32 %v830, %v905
        %v914 = vsub.f32 %v833, %v905
        %v915 = vsub.f32 %v835, %v905
        %v916 = vsub.f32 %v838, %v905
        %v917 = vsub.f32 %v840, %v905
        %v918 = vsub.f32 %v843, %v905
        %v919 = vsub.f32 %v845, %v905
        %v920 = vsub.f32 %v848, %v905
        %v921 = vsub.f32 %v850, %v905
        %v922 = vmul.f32 %v906, %v906
        %v923 = vmul.f32 %v907, %v907
        %v924 = vmul.f32 %v908, %v908
        %v925 = vmul.f32 %v909, %v909
        %v926 = vmul.f32 %v910, %v910
        %v927 = vmul.f32 %v911, %v911
        %v928 = vmul.f32 %v912, %v912
        %v929 = vmul.f32 %v913, %v913
        %v930 = vmul.f32 %v914, %v914
        %v931 = vmul.f32 %v915, %v915
        %v932 = vmul.f32 %v916, %v916
        %v933 = vmul.f32 %v917, %v917
        %v934 = vmul.f32 %v918, %v918
        %v935 = vmul.f32 %v919, %v919
        %v936 = vmul.f32 %v920, %v920
        %v937 = vmul.f32 %v921, %v921
        %v938 = vadd.f32 %v922, %v923
        %v939 = vadd.f32 %v938, %v924
        %v940 = vadd.f32 %v939, %v925
        %v941 = vadd.f32 %v940, %v926
        %v942 = vadd.f32 %v941, %v927
        %v943 = vadd.f32 %v942, %v928
        %v944 = vadd.f32 %v943, %v929
        %v945 = vadd.f32 %v944, %v930
        %v946 = vadd.f32 %v945, %v931
        %v947 = vadd.f32 %v946, %v932
        %v948 = vadd.f32 %v947, %v933
        %v949 = vadd.f32 %v948, %v934
        %v950 = vadd.f32 %v949, %v935
        %v951 = vadd.f32 %v950, %v936
        %v952 = vadd.f32 %v951, %v937
        %v953 = vrot.slane %v952, 4
        %v954 = vadd.f32 %v952, %v953
        %v955 = vrot.slane %v954, 2
        %v956 = vadd.f32 %v954, %v955
        %v957 = vrot.slane %v956, 1
        %v958 = vadd.f32 %v956, %v957
        %959 = vst [vmem:[%s218] sm:$0x1] %v904
        %960 = vst [vmem:[%s224] sm:$0x1] %v958
        %s961 = sand.u32 %s91, 1
        %s962 = scalar_lea.sflag [#allocation3], %s961
        %s963 = sand.u32 %s91, 1
        %s964 = smul.addr %s963, 64
        %s965 = scalar_lea.vmem [#allocation2], %s964
        %s966 = sand.u32 %s22, 1
        %s967 = scalar_lea.sflag [#allocation5], %s966
        %s968 = sand.u32 %s119, 1
        %s969 = scalar_lea.vmem [#allocation4], %s968
        %s970 = sand.u32 %s22, 1
        %s971 = scalar_lea.sflag [#allocation5], %s970
        %s972 = sand.u32 %s147, 1
        %s973 = scalar_lea.vmem [#allocation6], %s972
        // Predicated region
        $region29: #{tpu_custom_call.1} parent=27 // pred_check
          %p974 = pneg %p101
        $region30: #{tpu_custom_call.1} parent=27 // pred_check_branch
          %976 = sbr.rel (%p974) target = $region32
        $region31: #{tpu_custom_call.1} parent=27 // pred_region
          %s977 = smul.u32 8, %s27
          %979 = vsyncadd %s962, 0
          %s980 = smul.addr %s977, 2
          %s981 = smul.addr %s26, 32
          %s982 = sadd.s32 %s980, %s981
          %s983 = smul.addr %s982, 4
          %s984 = scalar_lea.hbm %s2, %s983
          %s985 = sshll.u32 %s965, 4
          %s986 = int_to_ptr.vmem [resolvable:$true] %s985
          %s987 = sshll.u32 %s984, 4
          %s988 = int_to_ptr.hbm [resolvable:$true] %s987
          %993 = dma.vmem_to_hbm [thread:$0]  %s986, 1024, %s988, %s962, 64, 64, 4
        $region32: #{tpu_custom_call.1} parent=27 // pred_fallthru
          _
        // Predicated region
        $region33: #{tpu_custom_call.1} parent=27 // pred_check
          %p994 = pneg %p129
        $region34: #{tpu_custom_call.1} parent=27 // pred_check_branch
          %996 = sbr.rel (%p994) target = $region36
        $region35: #{tpu_custom_call.1} parent=27 // pred_region
          %998 = vsyncadd %s967, 0
          %s999 = smul.addr %s26, 2
          %s1000 = sadd.s32 %s27, %s999
          %s1001 = scalar_lea.hbm %s3, %s1000
          %s1003 = sshll.u32 %s969, 4
          %s1004 = int_to_ptr.vmem [resolvable:$true] %s1003
          %s1005 = sshll.u32 %s1001, 4
          %s1006 = int_to_ptr.hbm [resolvable:$true] %s1005
          %1008 = dma.vmem_to_hbm [thread:$0]  %s1004, 16, %s1006, %s967
        $region36: #{tpu_custom_call.1} parent=27 // pred_fallthru
          _
        // Predicated region
        $region37: #{tpu_custom_call.1} parent=27 // pred_check
          %p1009 = pneg %p157
        $region38: #{tpu_custom_call.1} parent=27 // pred_check_branch
          %1011 = sbr.rel (%p1009) target = $region40
        $region39: #{tpu_custom_call.1} parent=27 // pred_region
          %1013 = vsyncadd %s971, 0
          %s1014 = smul.addr %s26, 2
          %s1015 = sadd.s32 %s27, %s1014
          %s1016 = scalar_lea.hbm %s4, %s1015
          %s1018 = sshll.u32 %s973, 4
          %s1019 = int_to_ptr.vmem [resolvable:$true] %s1018
          %s1020 = sshll.u32 %s1016, 4
          %s1021 = int_to_ptr.hbm [resolvable:$true] %s1020
          %1023 = dma.vmem_to_hbm [thread:$0]  %s1019, 16, %s1021, %s971
        $region40: #{tpu_custom_call.1} parent=27 // pred_fallthru
          _
      $region28: #{tpu_custom_call.1} parent=5 // pred_fallthru
        _
      %p1024 = scmp.le.s32.totalorder 2, %s17
      // Predicated region
      $region41: #{tpu_custom_call.1} parent=5 // pred_check
        %p1025 = pneg %p1024
      $region42: #{tpu_custom_call.1} parent=5 // pred_check_branch
        %1027 = sbr.rel (%p1025) target = $region44
      $region43: #{tpu_custom_call.1} parent=5 // pred_region
        %s1028 = ssub.s32 %s17, 2
        // Predicated region
        $region45: #{tpu_custom_call.1} parent=43 // pred_check
          %p1029 = pneg %p107
        $region46: #{tpu_custom_call.1} parent=43 // pred_check_branch
          %1031 = sbr.rel (%p1029) target = $region48
        $region47: #{tpu_custom_call.1} parent=43 // pred_region
          %s1032 = sand.u32 %s92, 1
          %s1033 = scalar_lea.sflag [#allocation3], %s1032
          %s1034 = sand.u32 %s92, 1
          %s1035 = smul.addr %s1034, 64
          %s1036 = scalar_lea.vmem [#allocation2], %s1035
          %1038 = dma.done %s1033, 1024
        $region48: #{tpu_custom_call.1} parent=43 // pred_fallthru
          _
        // Predicated region
        $region49: #{tpu_custom_call.1} parent=43 // pred_check
          %p1039 = pneg %p135
        $region50: #{tpu_custom_call.1} parent=43 // pred_check_branch
          %1041 = sbr.rel (%p1039) target = $region52
        $region51: #{tpu_custom_call.1} parent=43 // pred_region
          %s1042 = sand.u32 %s23, 1
          %s1043 = scalar_lea.sflag [#allocation5], %s1042
          %s1044 = sand.u32 %s120, 1
          %s1045 = scalar_lea.vmem [#allocation4], %s1044
          %1047 = dma.done %s1043, 16
        $region52: #{tpu_custom_call.1} parent=43 // pred_fallthru
          _
        // Predicated region
        $region53: #{tpu_custom_call.1} parent=43 // pred_check
          %p1048 = pneg %p163
        $region54: #{tpu_custom_call.1} parent=43 // pred_check_branch
          %1050 = sbr.rel (%p1048) target = $region56
        $region55: #{tpu_custom_call.1} parent=43 // pred_region
          %s1051 = sand.u32 %s23, 1
          %s1052 = scalar_lea.sflag [#allocation5], %s1051
          %s1053 = sand.u32 %s148, 1
          %s1054 = scalar_lea.vmem [#allocation6], %s1053
          %1056 = dma.done %s1052, 16
        $region56: #{tpu_custom_call.1} parent=43 // pred_fallthru
          _
      $region44: #{tpu_custom_call.1} parent=5 // pred_fallthru
        _
    $region6: #{tpu_custom_call.1} parent=1 // loop_footer
      %s21 = sadd.s32 1, %s17
    $region7: #{tpu_custom_call.1} parent=1 // loop_footer_branch
      %16 = sbr.rel target = $region3
    $region8: #{tpu_custom_call.1} parent=1 // loop_exit
      _
    %1057 = vsyncpa [#allocation3], 1
    %s1058 = scalar_lea.sflag [#allocation3], 1
    %1059 = vsyncpa %s1058, 1
    %1060 = vsyncpa [#allocation5], 1
    %s1061 = scalar_lea.sflag [#allocation5], 1
    %1062 = vsyncpa %s1061, 1

</llo_original>
